<compile_context>
chip_gen: v6e
topology: v6e:2x2x1
jax: 0.10.0
libtpu: 0.0.40
codegen_flags: <defaults>
</compile_context>

<pallas_src>
import jax
import jax.numpy as jnp
from jax.experimental import pallas as pl
from jax.experimental.pallas import tpu as pltpu


def gmf_kernel(u_idx_ref, i_idx_ref, user_tbl_ref, item_tbl_ref, w_ref, b_ref,
               out_ref):
    """One batch tile of the GMF forward.

    u_idx_ref, i_idx_ref : VMEM int32 [TB, 1]        (batch tile of ids)
    user_tbl_ref         : VMEM f32   [num_users, D] (resident across grid)
    item_tbl_ref         : VMEM f32   [num_items, D] (resident across grid)
    w_ref                : VMEM f32   [1, D]         (Linear weight)
    b_ref                : SMEM f32   [1]            (Linear bias)
    out_ref              : VMEM f32   [1, TB]        (lane-dense ratings)
    """
    tb = u_idx_ref.shape[0]
    num_users = user_tbl_ref.shape[0]
    num_items = item_tbl_ref.shape[0]

    u_ids = u_idx_ref[...]                               # (TB, 1) int32
    i_ids = i_idx_ref[...]                               # (TB, 1) int32

    # One-hot gather on the MXU: one_hot(idx) @ table -> (TB, D).
    u_onehot = (jax.lax.broadcasted_iota(jnp.int32, (tb, num_users), 1)
                == u_ids).astype(jnp.float32)            # (TB, num_users)
    i_onehot = (jax.lax.broadcasted_iota(jnp.int32, (tb, num_items), 1)
                == i_ids).astype(jnp.float32)            # (TB, num_items)

    u_emb = jnp.dot(u_onehot, user_tbl_ref[...],
                    preferred_element_type=jnp.float32)  # (TB, D)
    i_emb = jnp.dot(i_onehot, item_tbl_ref[...],
                    preferred_element_type=jnp.float32)  # (TB, D)

    prod = u_emb * i_emb                                 # (TB, D), VPU

    # Affine output: contract D on the MXU; result is (1, TB) -> batch on the
    # lane axis so the final store is lane-dense.
    logits = jax.lax.dot_general(
        w_ref[...], prod,
        dimension_numbers=(((1,), (1,)), ((), ())),
        preferred_element_type=jnp.float32)              # (1, TB)
    logits = logits + b_ref[0]

    out_ref[...] = jax.nn.sigmoid(logits)                # exp on EUP


def gmf_forward(user_idx, item_idx, user_tbl, item_tbl, w, b, *,
                batch_tile=128):
    """GMF forward. Returns sigmoid ratings of shape (B, 1) float32."""
    B = user_idx.shape[0]
    num_users, D = user_tbl.shape
    num_items = item_tbl.shape[0]

    # Table-resident design is only valid while both tables fit the smallest
    # default scoped-VMEM budget (16 MiB on v5e; v7x physical VMEM is 64 MiB).
    tbl_bytes = (num_users + num_items) * D * 4
    if tbl_bytes > 16 * 1024 * 1024:
        raise ValueError(
            "Embedding tables too large for VMEM-resident GMF kernel; "
            "use a DMA-gather variant (see TODO at top of file).")

    # Bounds safety: OOB VMEM reads on TPU are silent — clamp indices.
    u = jnp.clip(user_idx.astype(jnp.int32), 0, num_users - 1)
    it = jnp.clip(item_idx.astype(jnp.int32), 0, num_items - 1)

    # Batch tiling (grid is parallel -> shards across v7x's 2 TensorCores).
    tb = min(batch_tile, B)
    n_tiles = pl.cdiv(B, tb)
    Bp = n_tiles * tb
    if Bp != B:
        u = jnp.pad(u, (0, Bp - B))      # pad index 0 is valid after clamp
        it = jnp.pad(it, (0, Bp - B))
    u = u.reshape(Bp, 1)
    it = it.reshape(Bp, 1)

    out = pl.pallas_call(
        gmf_kernel,
        out_shape=jax.ShapeDtypeStruct((1, Bp), jnp.float32),
        grid_spec=pltpu.PrefetchScalarGridSpec(
            num_scalar_prefetch=0,
            grid=(n_tiles,),
            in_specs=[
                pl.BlockSpec((tb, 1), lambda i: (i, 0)),            # user ids
                pl.BlockSpec((tb, 1), lambda i: (i, 0)),            # item ids
                pl.BlockSpec((num_users, D), lambda i: (0, 0)),     # user table
                pl.BlockSpec((num_items, D), lambda i: (0, 0)),     # item table
                pl.BlockSpec((1, D), lambda i: (0, 0)),             # linear W
                pl.BlockSpec(memory_space=pltpu.MemorySpace.SMEM),  # linear b
            ],
            out_specs=pl.BlockSpec((1, tb), lambda i: (0, i)),
        ),
        compiler_params=pltpu.CompilerParams(
            dimension_semantics=("parallel",)),
    )(u, it, user_tbl, item_tbl, w, b)

    # Lane-dense (1, Bp) -> PyTorch-shaped (B, 1) outside the kernel.
    return out[0, :B].reshape(B, 1)


if __name__ == "__main__":
    num_users, num_items, latent_dim, batch = 10, 12, 32, 8

    key = jax.random.PRNGKey(0)
    k_u, k_i, k_w, k_b, k_ui, k_ii = jax.random.split(key, 6)

    # Deterministic parameter init (matches PyTorch shapes):
    #   Embedding weights ~ N(0, 1); Linear weight/bias ~ U(-1/sqrt(D), 1/sqrt(D)).
    user_tbl = jax.random.normal(k_u, (num_users, latent_dim), jnp.float32)
    item_tbl = jax.random.normal(k_i, (num_items, latent_dim), jnp.float32)
    bound = 1.0 / (latent_dim ** 0.5)
    w = jax.random.uniform(k_w, (1, latent_dim), jnp.float32, -bound, bound)
    b = jax.random.uniform(k_b, (1,), jnp.float32, -bound, bound)

    user_idx = jax.random.randint(k_ui, (batch,), 0, num_users, jnp.int32)
    item_idx = jax.random.randint(k_ii, (batch,), 0, num_items, jnp.int32)

    rating = gmf_forward(user_idx, item_idx, user_tbl, item_tbl, w, b)
    rating = jax.block_until_ready(rating)

    # Pure-JAX reference for correctness.
    ue = user_tbl[user_idx]
    ie = item_tbl[item_idx]
    ref = jax.nn.sigmoid((ue * ie) @ w.T + b)

    assert rating.shape == (batch, 1)
    assert jnp.allclose(rating, ref, atol=1e-5, rtol=1e-5)
    print("KERNEL_OK")
</pallas_src>

<mosaic_0001>
module attributes {stable_mosaic.version = 11 : i64} {
  func.func @gmf_kernel(%arg0: i32, %arg1: memref<8x1xi32, #tpu.memory_space<vmem>>, %arg2: memref<8x1xi32, #tpu.memory_space<vmem>>, %arg3: memref<10x32xf32, #tpu.memory_space<vmem>>, %arg4: memref<12x32xf32, #tpu.memory_space<vmem>>, %arg5: memref<1x32xf32, #tpu.memory_space<vmem>>, %arg6: memref<1xf32, #tpu.memory_space<smem>>, %arg7: memref<1x8xf32, #tpu.memory_space<vmem>>) attributes {dimension_semantics = [#tpu.dimension_semantics<parallel>], iteration_bounds = array<i64: 1>, scalar_prefetch = 0 : i64, scratch_operands = 0 : i64, tpu.core_type = #tpu.core_type<tc>, window_params = [{transform_indices = @transform_0, window_bounds = array<i64: 8, 1>}, {transform_indices = @transform_1, window_bounds = array<i64: 8, 1>}, {pipeline_mode = #tpu.pipeline_mode<synchronous>, transform_indices = @transform_2, window_bounds = array<i64: 10, 32>}, {pipeline_mode = #tpu.pipeline_mode<synchronous>, transform_indices = @transform_3, window_bounds = array<i64: 12, 32>}, {pipeline_mode = #tpu.pipeline_mode<synchronous>, transform_indices = @transform_4, window_bounds = array<i64: 1, 32>}, {transform_indices = @transform_5, window_bounds = array<i64: 1>}, {transform_indices = @transform_6, window_bounds = array<i64: 1, 8>}]} {
    %c0 = arith.constant 0 : index
    %c0_0 = arith.constant 0 : index
    %0 = vector.load %arg1[%c0, %c0_0] : memref<8x1xi32, #tpu.memory_space<vmem>>, vector<8x1xi32>
    %c0_1 = arith.constant 0 : index
    %c0_2 = arith.constant 0 : index
    %1 = vector.load %arg2[%c0_1, %c0_2] : memref<8x1xi32, #tpu.memory_space<vmem>>, vector<8x1xi32>
    %2 = tpu.iota {dimensions = array<i32: 1>} : vector<8x10xi32>
    %3 = vector.broadcast %0 : vector<8x1xi32> to vector<8x10xi32>
    %4 = arith.cmpi eq, %2, %3 : vector<8x10xi32>
    %5 = arith.extui %4 : vector<8x10xi1> to vector<8x10xi32>
    %6 = arith.sitofp %5 : vector<8x10xi32> to vector<8x10xf32>
    %7 = tpu.iota {dimensions = array<i32: 1>} : vector<8x12xi32>
    %8 = vector.broadcast %1 : vector<8x1xi32> to vector<8x12xi32>
    %9 = arith.cmpi eq, %7, %8 : vector<8x12xi32>
    %10 = arith.extui %9 : vector<8x12xi1> to vector<8x12xi32>
    %11 = arith.sitofp %10 : vector<8x12xi32> to vector<8x12xf32>
    %c0_3 = arith.constant 0 : index
    %c0_4 = arith.constant 0 : index
    %12 = vector.load %arg3[%c0_3, %c0_4] : memref<10x32xf32, #tpu.memory_space<vmem>>, vector<10x32xf32>
    %cst = arith.constant dense<0.000000e+00> : vector<8x32xf32>
    %13 = tpu.matmul %6, %12, %cst {dimension_numbers = #tpu.dot_dimension_numbers<[1], [0], [0], [1], [0, 0, 1, 1], [], []>} : vector<8x10xf32>, vector<10x32xf32>, vector<8x32xf32> -> vector<8x32xf32>
    %c0_5 = arith.constant 0 : index
    %c0_6 = arith.constant 0 : index
    %14 = vector.load %arg4[%c0_5, %c0_6] : memref<12x32xf32, #tpu.memory_space<vmem>>, vector<12x32xf32>
    %cst_7 = arith.constant dense<0.000000e+00> : vector<8x32xf32>
    %15 = tpu.matmul %11, %14, %cst_7 {dimension_numbers = #tpu.dot_dimension_numbers<[1], [0], [0], [1], [0, 0, 1, 1], [], []>} : vector<8x12xf32>, vector<12x32xf32>, vector<8x32xf32> -> vector<8x32xf32>
    %16 = arith.mulf %13, %15 : vector<8x32xf32>
    %c0_8 = arith.constant 0 : index
    %c0_9 = arith.constant 0 : index
    %17 = vector.load %arg5[%c0_8, %c0_9] : memref<1x32xf32, #tpu.memory_space<vmem>>, vector<1x32xf32>
    %cst_10 = arith.constant dense<0.000000e+00> : vector<1x8xf32>
    %18 = tpu.matmul %17, %16, %cst_10 {dimension_numbers = #tpu.dot_dimension_numbers<[1], [1], [0], [0], [0, 0, 1, 0], [], []>} : vector<1x32xf32>, vector<8x32xf32>, vector<1x8xf32> -> vector<1x8xf32>
    %c0_11 = arith.constant 0 : index
    %19 = memref.load %arg6[%c0_11] : memref<1xf32, #tpu.memory_space<smem>>
    %20 = vector.broadcast %19 : f32 to vector<1x8xf32>
    %21 = arith.addf %18, %20 : vector<1x8xf32>
    %22 = arith.negf %21 : vector<1x8xf32>
    %23 = math.exp %22 : vector<1x8xf32>
    %cst_12 = arith.constant 1.000000e+00 : f32
    %24 = vector.broadcast %cst_12 : f32 to vector<1x8xf32>
    %25 = arith.addf %24, %23 : vector<1x8xf32>
    %26 = arith.divf %24, %25 : vector<1x8xf32>
    %c0_13 = arith.constant 0 : index
    %c0_14 = arith.constant 0 : index
    %27 = vector.load %arg7[%c0_13, %c0_14] : memref<1x8xf32, #tpu.memory_space<vmem>>, vector<1x8xf32>
    tpu.vector_store %arg7[%c0_13, %c0_14], %26 {strides = array<i32>} : memref<1x8xf32, #tpu.memory_space<vmem>>, vector<1x8xf32>,
    return
  }
  func.func @transform_0(%arg0: i32) -> (i32, i32) {
    %c0_i32 = arith.constant 0 : i32
    %c0_i32_0 = arith.constant 0 : i32
    return %arg0, %c0_i32 : i32, i32
  }
  func.func @transform_1(%arg0: i32) -> (i32, i32) {
    %c0_i32 = arith.constant 0 : i32
    %c0_i32_0 = arith.constant 0 : i32
    return %arg0, %c0_i32 : i32, i32
  }
  func.func @transform_2(%arg0: i32) -> (i32, i32) {
    %c0_i32 = arith.constant 0 : i32
    %c0_i32_0 = arith.constant 0 : i32
    %c0_i32_1 = arith.constant 0 : i32
    return %c0_i32, %c0_i32_0 : i32, i32
  }
  func.func @transform_3(%arg0: i32) -> (i32, i32) {
    %c0_i32 = arith.constant 0 : i32
    %c0_i32_0 = arith.constant 0 : i32
    %c0_i32_1 = arith.constant 0 : i32
    return %c0_i32, %c0_i32_0 : i32, i32
  }
  func.func @transform_4(%arg0: i32) -> (i32, i32) {
    %c0_i32 = arith.constant 0 : i32
    %c0_i32_0 = arith.constant 0 : i32
    %c0_i32_1 = arith.constant 0 : i32
    return %c0_i32, %c0_i32_0 : i32, i32
  }
  func.func @transform_5(%arg0: i32) -> i32 {
    %c0_i32 = arith.constant 0 : i32
    %c0_i32_0 = arith.constant 0 : i32
    return %c0_i32 : i32
  }
  func.func @transform_6(%arg0: i32) -> (i32, i32) {
    %c0_i32 = arith.constant 0 : i32
    %c0_i32_0 = arith.constant 0 : i32
    return %c0_i32, %arg0 : i32, i32
  }
}

</mosaic_0001>

<llo_original>
// kernel: tpu_custom_call.1
$region0: #{tpu_custom_call.1}
  #allocation0 [shape = 'u32[]', space=smem, size = 0x4, offset = 0x4, fixed_abs, tag = 'smem constant byte address 0x4 - core index']
  #allocation1 [shape = 'u32[144,128]{1,0:T(1,128)}', space=vmem, size = 0x12000, scoped, tag = 'internal scratch']
  #allocation2 [shape = 'f32[1]{0:T(128)S(6)}', space=smem, size = 0x200, scoped, tag = 'scoped memory for tpu_custom_call.1']
  %s0 = inlined_call_operand.vmem [shape: s32[8,1], index: 0, kind: input, shape index: {}]
  %s1 = inlined_call_operand.vmem [shape: s32[8,1], index: 1, kind: input, shape index: {}]
  %s2 = inlined_call_operand.vmem [shape: f32[10,32], index: 2, kind: input, shape index: {}]
  %s3 = inlined_call_operand.hbm [shape: f32[12,32], index: 3, kind: input, shape index: {}]
  %s4 = inlined_call_operand.vmem [shape: f32[1,32], index: 4, kind: input, shape index: {}]
  %s5 = inlined_call_operand.<no memory space> [shape: f32[1], index: 5, kind: input, shape index: {}]
  %s6 = inlined_call_operand.hbm [shape: f32[1,8], index: 6, kind: output, shape index: {}]
  %s7 = sld [smem:[#allocation0]]
  $region38: #{tpu_custom_call.1} parent=0
    _
  %s9 = ssub.s32 1, %s7
  %s10 = scalar_select 0, %s9, %s7
  %11 = sst [smem:[#allocation2]] %s5
  $region1: #{tpu_custom_call.1} parent=0
    #allocation3 [shape = 'u8[8192]{0}', space=vmem, size = 0x2000, scoped, tag = 'input window, operand 3, single buffered']
    #allocation4 [shape = 's32[1]{0}', space=sflag, size = 0x4, scoped, tag = 'scoped memory for tpu_custom_call.1']
    #allocation5 [shape = 's32[1]{0}', space=sflag, size = 0x4, scoped, tag = 'scoped memory for tpu_custom_call.1']
    #allocation6 [shape = 'u8[512]{0}', space=vmem, size = 0x400, scoped, tag = 'output window, operand 0, single buffered']
    %12 = vsyncpa [#allocation4], 0
    %13 = vsyncpa [#allocation5], 0
    // Predicated region
    $region2: #{tpu_custom_call.1} parent=1 // pred_check
      _
    $region3: #{tpu_custom_call.1} parent=1 // pred_check_branch
      %15 = sbr.rel (0) target = $region5
    $region4: #{tpu_custom_call.1} parent=1 // pred_region
      _
    $region5: #{tpu_custom_call.1} parent=1 // pred_fallthru
      _
    // Predicated region
    $region6: #{tpu_custom_call.1} parent=1 // pred_check
      _
    $region7: #{tpu_custom_call.1} parent=1 // pred_check_branch
      %17 = sbr.rel (0) target = $region9
    $region8: #{tpu_custom_call.1} parent=1 // pred_region
      _
    $region9: #{tpu_custom_call.1} parent=1 // pred_fallthru
      _
    // Predicated region
    $region10: #{tpu_custom_call.1} parent=1 // pred_check
      _
    $region11: #{tpu_custom_call.1} parent=1 // pred_check_branch
      %19 = sbr.rel (0) target = $region13
    $region12: #{tpu_custom_call.1} parent=1 // pred_region
      _
    $region13: #{tpu_custom_call.1} parent=1 // pred_fallthru
      _
    // Predicated region
    $region14: #{tpu_custom_call.1} parent=1 // pred_check
      _
    $region15: #{tpu_custom_call.1} parent=1 // pred_check_branch
      %21 = sbr.rel (0) target = $region17
    $region16: #{tpu_custom_call.1} parent=1 // pred_region
      %s23 = ssub.s32 256, 256
      %24 = vsyncadd [#allocation4], %s23
      %s25 = sshll.u32 [#allocation3], 4
      %s26 = int_to_ptr.vmem [resolvable:$true] %s25
      %31 = dma.hbm_to_vmem [thread:$0]  %s3, 256, %s26, [#allocation4], 128, 128, 8
    $region17: #{tpu_custom_call.1} parent=1 // pred_fallthru
      _
    // Predicated region
    $region18: #{tpu_custom_call.1} parent=1 // pred_check
      _
    $region19: #{tpu_custom_call.1} parent=1 // pred_check_branch
      %33 = sbr.rel (0) target = $region21
    $region20: #{tpu_custom_call.1} parent=1 // pred_region
      _
    $region21: #{tpu_custom_call.1} parent=1 // pred_fallthru
      _
    // Predicated region
    $region22: #{tpu_custom_call.1} parent=1 // pred_check
      _
    $region23: #{tpu_custom_call.1} parent=1 // pred_check_branch
      %35 = sbr.rel (0) target = $region25
    $region24: #{tpu_custom_call.1} parent=1 // pred_region
      _
    $region25: #{tpu_custom_call.1} parent=1 // pred_fallthru
      _
    // Predicated region
    $region26: #{tpu_custom_call.1} parent=1 // pred_check
      _
    $region27: #{tpu_custom_call.1} parent=1 // pred_check_branch
      %37 = sbr.rel (0) target = $region29
    $region28: #{tpu_custom_call.1} parent=1 // pred_region
      %38 = dma.done [#allocation4], 256
    $region29: #{tpu_custom_call.1} parent=1 // pred_fallthru
      _
    %v39 = vld [vmem:[%s0] sm:$0xff]
    %v40 = vld [vmem:[%s1] sm:$0xff]
    %v41 = vlaneseq
    %v42 = vand.u32 %v41, 127
    %43 = vset.pattern.permute.xlu0 0
    %44 = vperm.xlu0 %43, %v39
    %v45 = vpop.permute.xlu0 %44
    %vm46 = vcmp.eq.s32.totalorder %v42, %v45
    %v47 = vsel %vm46, 1, 0
    %v48 = vcvt.s32.f32 %v47
    %49 = vset.pattern.permute.xlu0 0
    %50 = vperm.xlu0 %49, %v40
    %v51 = vpop.permute.xlu0 %50
    %vm52 = vcmp.eq.s32.totalorder %v42, %v51
    %v53 = vsel %vm52, 1, 0
    %v54 = vcvt.s32.f32 %v53
    %v55 = vld [vmem:[%s2] sm:$0xff]
    %v56 = vld [vmem:[%s2 + $0x8] sm:$0x3]
    %vm57 = vcmask 80896
    %v59 = vsel %vm57, %v48, 0
    %vm61 = vcmask 1041408
    %v63 = vsel %vm61, %v56, 0
    %65 = vmatprep.subr.mxu0 0.0
    %66 = vmatpush1.msra.mxu0 0.0
    %67 = vmatprep.subr.mxu0 0.0
    %68 = vmatpush1.msra.mxu0 0.0
    %69 = vmatprep.subr.mxu0 0.0
    %70 = vmatpush1.msra.mxu0 0.0
    %71 = vmatprep.subr.mxu0 0.0
    %72 = vmatpush1.msra.mxu0 0.0
    %73 = vmatprep.subr.mxu0 0.0
    %74 = vmatpush1.msra.mxu0 0.0
    %75 = vmatprep.subr.mxu0 0.0
    %76 = vmatpush1.msra.mxu0 0.0
    %77 = vmatprep.subr.mxu0 0.0
    %78 = vmatpush1.msra.mxu0 0.0
    %79 = vmatprep.subr.mxu0 0.0
    %80 = vmatpush1.msra.mxu0 0.0
    %81 = vmatprep.subr.mxu0 0.0
    %82 = vmatpush1.msra.mxu0 0.0
    %83 = vmatprep.subr.mxu0 0.0
    %84 = vmatpush1.msra.mxu0 0.0
    %85 = vmatprep.subr.mxu0 0.0
    %86 = vmatpush1.msra.mxu0 0.0
    %87 = vmatprep.subr.mxu0 0.0
    %88 = vmatpush1.msra.mxu0 0.0
    %89 = vmatprep.subr.mxu0 0.0
    %90 = vmatpush1.msra.mxu0 0.0
    %91 = vmatprep.subr.mxu0 0.0
    %92 = vmatpush1.msra.mxu0 0.0
    %93 = vmatprep.subr.mxu0 0.0
    %94 = vmatpush1.msra.mxu0 %v63
    %95 = vmatprep.subr.mxu0 0.0
    %96 = vmatpush1.msra.mxu0 %v55
    %97 = vmatprep.subr.mxu0 0.0
    %98 = vmatpush2.msra.mxu0 0.0
    %99 = vmatprep.subr.mxu0 0.0
    %100 = vmatpush2.msra.mxu0 0.0
    %101 = vmatprep.subr.mxu0 0.0
    %102 = vmatpush2.msra.mxu0 0.0
    %103 = vmatprep.subr.mxu0 0.0
    %104 = vmatpush2.msra.mxu0 0.0
    %105 = vmatprep.subr.mxu0 0.0
    %106 = vmatpush2.msra.mxu0 0.0
    %107 = vmatprep.subr.mxu0 0.0
    %108 = vmatpush2.msra.mxu0 0.0
    %109 = vmatprep.subr.mxu0 0.0
    %110 = vmatpush2.msra.mxu0 0.0
    %111 = vmatprep.subr.mxu0 0.0
    %112 = vmatpush2.msra.mxu0 0.0
    %113 = vmatprep.subr.mxu0 0.0
    %114 = vmatpush2.msra.mxu0 0.0
    %115 = vmatprep.subr.mxu0 0.0
    %116 = vmatpush2.msra.mxu0 0.0
    %117 = vmatprep.subr.mxu0 0.0
    %118 = vmatpush2.msra.mxu0 0.0
    %119 = vmatprep.subr.mxu0 0.0
    %120 = vmatpush2.msra.mxu0 0.0
    %121 = vmatprep.subr.mxu0 0.0
    %122 = vmatpush2.msra.mxu0 0.0
    %123 = vmatprep.subr.mxu0 0.0
    %124 = vmatpush2.msra.mxu0 0.0
    %125 = vmatprep.subr.mxu0 0.0
    %126 = vmatpush2.msra.mxu0 0.0
    %127 = vmatprep.subr.mxu0 0.0
    %128 = vmatpush2.msra.mxu0 0.0
    %129 = vmatprep.mubr.f32.mxu0 0.0
    %130 = vmatmul.mubr.f32.gmra.mxu0 %v59
    %v131 = vpop.f32.mrf.mxu0
    %v132 = vadd.f32 0.0, %v131
    %v133 = vpop.f32.mrf.mxu0
    %134 = vdwg.mxu0
    %v135 = vld [vmem:[#allocation3] sm:$0xff]
    %v136 = vld [vmem:[#allocation3 + $0x8] sm:$0xf]
    %vm137 = vcmask 97280
    %v139 = vsel %vm137, %v54, 0
    %vm141 = vcmask 1043456
    %v143 = vsel %vm141, %v136, 0
    %145 = vmatprep.subr.mxu0 0.0
    %146 = vmatpush1.msra.mxu0 0.0
    %147 = vmatprep.subr.mxu0 0.0
    %148 = vmatpush1.msra.mxu0 0.0
    %149 = vmatprep.subr.mxu0 0.0
    %150 = vmatpush1.msra.mxu0 0.0
    %151 = vmatprep.subr.mxu0 0.0
    %152 = vmatpush1.msra.mxu0 0.0
    %153 = vmatprep.subr.mxu0 0.0
    %154 = vmatpush1.msra.mxu0 0.0
    %155 = vmatprep.subr.mxu0 0.0
    %156 = vmatpush1.msra.mxu0 0.0
    %157 = vmatprep.subr.mxu0 0.0
    %158 = vmatpush1.msra.mxu0 0.0
    %159 = vmatprep.subr.mxu0 0.0
    %160 = vmatpush1.msra.mxu0 0.0
    %161 = vmatprep.subr.mxu0 0.0
    %162 = vmatpush1.msra.mxu0 0.0
    %163 = vmatprep.subr.mxu0 0.0
    %164 = vmatpush1.msra.mxu0 0.0
    %165 = vmatprep.subr.mxu0 0.0
    %166 = vmatpush1.msra.mxu0 0.0
    %167 = vmatprep.subr.mxu0 0.0
    %168 = vmatpush1.msra.mxu0 0.0
    %169 = vmatprep.subr.mxu0 0.0
    %170 = vmatpush1.msra.mxu0 0.0
    %171 = vmatprep.subr.mxu0 0.0
    %172 = vmatpush1.msra.mxu0 0.0
    %173 = vmatprep.subr.mxu0 0.0
    %174 = vmatpush1.msra.mxu0 %v143
    %175 = vmatprep.subr.mxu0 0.0
    %176 = vmatpush1.msra.mxu0 %v135
    %177 = vmatprep.subr.mxu0 0.0
    %178 = vmatpush2.msra.mxu0 0.0
    %179 = vmatprep.subr.mxu0 0.0
    %180 = vmatpush2.msra.mxu0 0.0
    %181 = vmatprep.subr.mxu0 0.0
    %182 = vmatpush2.msra.mxu0 0.0
    %183 = vmatprep.subr.mxu0 0.0
    %184 = vmatpush2.msra.mxu0 0.0
    %185 = vmatprep.subr.mxu0 0.0
    %186 = vmatpush2.msra.mxu0 0.0
    %187 = vmatprep.subr.mxu0 0.0
    %188 = vmatpush2.msra.mxu0 0.0
    %189 = vmatprep.subr.mxu0 0.0
    %190 = vmatpush2.msra.mxu0 0.0
    %191 = vmatprep.subr.mxu0 0.0
    %192 = vmatpush2.msra.mxu0 0.0
    %193 = vmatprep.subr.mxu0 0.0
    %194 = vmatpush2.msra.mxu0 0.0
    %195 = vmatprep.subr.mxu0 0.0
    %196 = vmatpush2.msra.mxu0 0.0
    %197 = vmatprep.subr.mxu0 0.0
    %198 = vmatpush2.msra.mxu0 0.0
    %199 = vmatprep.subr.mxu0 0.0
    %200 = vmatpush2.msra.mxu0 0.0
    %201 = vmatprep.subr.mxu0 0.0
    %202 = vmatpush2.msra.mxu0 0.0
    %203 = vmatprep.subr.mxu0 0.0
    %204 = vmatpush2.msra.mxu0 0.0
    %205 = vmatprep.subr.mxu0 0.0
    %206 = vmatpush2.msra.mxu0 0.0
    %207 = vmatprep.subr.mxu0 0.0
    %208 = vmatpush2.msra.mxu0 0.0
    %209 = vmatprep.mubr.f32.mxu0 0.0
    %210 = vmatmul.mubr.f32.gmra.mxu0 %v139
    %v211 = vpop.f32.mrf.mxu0
    %v212 = vadd.f32 0.0, %v211
    %v213 = vpop.f32.mrf.mxu0
    %214 = vdwg.mxu0
    %v215 = vmul.f32 %v132, %v212
    %v216 = vld [vmem:[%s4] sm:$0x1]
    %s217 = sld [smem:[#allocation2]]
    %v218 = vstv %s217
    %vm219 = vcmask 261120
    %v221 = vsel %vm219, %v216, 0
    %v224 = vsel %vm219, %v215, 0
    %226 = vmatprep.subr.mxu0 0.0
    %227 = vmatpush1.xpose.msra.mxu0 0.0
    %228 = vmatprep.subr.mxu0 0.0
    %229 = vmatpush1.xpose.msra.mxu0 0.0
    %230 = vmatprep.subr.mxu0 0.0
    %231 = vmatpush1.xpose.msra.mxu0 0.0
    %232 = vmatprep.subr.mxu0 0.0
    %233 = vmatpush1.xpose.msra.mxu0 0.0
    %234 = vmatprep.subr.mxu0 0.0
    %235 = vmatpush1.xpose.msra.mxu0 0.0
    %236 = vmatprep.subr.mxu0 0.0
    %237 = vmatpush1.xpose.msra.mxu0 0.0
    %238 = vmatprep.subr.mxu0 0.0
    %239 = vmatpush1.xpose.msra.mxu0 0.0
    %240 = vmatprep.subr.mxu0 0.0
    %241 = vmatpush1.xpose.msra.mxu0 0.0
    %242 = vmatprep.subr.mxu0 0.0
    %243 = vmatpush1.xpose.msra.mxu0 0.0
    %244 = vmatprep.subr.mxu0 0.0
    %245 = vmatpush1.xpose.msra.mxu0 0.0
    %246 = vmatprep.subr.mxu0 0.0
    %247 = vmatpush1.xpose.msra.mxu0 0.0
    %248 = vmatprep.subr.mxu0 0.0
    %249 = vmatpush1.xpose.msra.mxu0 0.0
    %250 = vmatprep.subr.mxu0 0.0
    %251 = vmatpush1.xpose.msra.mxu0 0.0
    %252 = vmatprep.subr.mxu0 0.0
    %253 = vmatpush1.xpose.msra.mxu0 0.0
    %254 = vmatprep.subr.mxu0 0.0
    %255 = vmatpush1.xpose.msra.mxu0 0.0
    %256 = vmatprep.subr.mxu0 0.0
    %257 = vmatpush1.xpose.msra.mxu0 %v224
    %258 = vmatprep.subr.mxu0 0.0
    %259 = vmatpush2.xpose.msra.mxu0 0.0
    %260 = vmatprep.subr.mxu0 0.0
    %261 = vmatpush2.xpose.msra.mxu0 0.0
    %262 = vmatprep.subr.mxu0 0.0
    %263 = vmatpush2.xpose.msra.mxu0 0.0
    %264 = vmatprep.subr.mxu0 0.0
    %265 = vmatpush2.xpose.msra.mxu0 0.0
    %266 = vmatprep.subr.mxu0 0.0
    %267 = vmatpush2.xpose.msra.mxu0 0.0
    %268 = vmatprep.subr.mxu0 0.0
    %269 = vmatpush2.xpose.msra.mxu0 0.0
    %270 = vmatprep.subr.mxu0 0.0
    %271 = vmatpush2.xpose.msra.mxu0 0.0
    %272 = vmatprep.subr.mxu0 0.0
    %273 = vmatpush2.xpose.msra.mxu0 0.0
    %274 = vmatprep.subr.mxu0 0.0
    %275 = vmatpush2.xpose.msra.mxu0 0.0
    %276 = vmatprep.subr.mxu0 0.0
    %277 = vmatpush2.xpose.msra.mxu0 0.0
    %278 = vmatprep.subr.mxu0 0.0
    %279 = vmatpush2.xpose.msra.mxu0 0.0
    %280 = vmatprep.subr.mxu0 0.0
    %281 = vmatpush2.xpose.msra.mxu0 0.0
    %282 = vmatprep.subr.mxu0 0.0
    %283 = vmatpush2.xpose.msra.mxu0 0.0
    %284 = vmatprep.subr.mxu0 0.0
    %285 = vmatpush2.xpose.msra.mxu0 0.0
    %286 = vmatprep.subr.mxu0 0.0
    %287 = vmatpush2.xpose.msra.mxu0 0.0
    %288 = vmatprep.subr.mxu0 0.0
    %289 = vmatpush2.xpose.msra.mxu0 0.0
    %290 = vmatprep.mubr.f32.mxu0 0.0
    %291 = vmatmul.mubr.f32.gmra.mxu0 %v221
    %v292 = vpop.f32.mrf.mxu0
    %v293 = vadd.f32 %v218, %v292
    %v294 = vpop.f32.mrf.mxu0
    %295 = vdwg.mxu0
    %v296 = vxor.u32 %v293, 2147483648
    %v297 = vmul.f32 %v296, 1.442695
    %v298 = vpow.pop %v297
    %v299 = vadd.f32 %v298, 1.0
    %v300 = vrcp.pop %v299
    %v301 = vmul.f32 1.0, %v300
    %vm302 = vcmask 57344
    %303 = vst.msk [vmem:[#allocation6] sm:$0x1] %vm302, %v301
    // Predicated region
    $region30: #{tpu_custom_call.1} parent=1 // pred_check
      _
    $region31: #{tpu_custom_call.1} parent=1 // pred_check_branch
      %305 = sbr.rel (0) target = $region33
    $region32: #{tpu_custom_call.1} parent=1 // pred_region
      %s307 = ssub.s32 16, 16
      %308 = vsyncadd [#allocation5], %s307
      %s310 = sshll.u32 [#allocation6], 4
      %s311 = int_to_ptr.vmem [resolvable:$true] %s310
      %313 = dma.vmem_to_hbm [thread:$0]  %s311, 16, %s6, [#allocation5]
    $region33: #{tpu_custom_call.1} parent=1 // pred_fallthru
      _
    // Predicated region
    $region34: #{tpu_custom_call.1} parent=1 // pred_check
      _
    $region35: #{tpu_custom_call.1} parent=1 // pred_check_branch
      %315 = sbr.rel (0) target = $region37
    $region36: #{tpu_custom_call.1} parent=1 // pred_region
      %316 = dma.done [#allocation5], 16
    $region37: #{tpu_custom_call.1} parent=1 // pred_fallthru
      _
    %317 = vsyncpa [#allocation4], 1
    %318 = vsyncpa [#allocation5], 1

</llo_original>
